<compile_context>
chip_gen: v7x
topology: tpu7x:2x2x1
jax: 0.10.0
libtpu: 0.0.40
codegen_flags: <defaults>
</compile_context>

<pallas_src>
import functools

import jax
import jax.numpy as jnp
from jax import lax
from jax.experimental import pallas as pl
from jax.experimental.pallas import tpu as pltpu


def _round_up(x, m):
    return ((x + m - 1) // m) * m


def _padded_rows(n, dtype):
    # Mosaic pads the second-minor dim to the sublane granule:
    # 8 rows for 32-bit dtypes, 16 for 16-bit, 32 for 8-bit.
    gran = 8 * (4 // jnp.dtype(dtype).itemsize)
    return _round_up(n, gran)


def _vmem_capacity_bytes():
    try:
        cap = pltpu.get_tpu_info().vmem_capacity_bytes
        if cap:
            return int(cap)
    except Exception:
        pass
    return 64 * 1024 * 1024                    # conservative (v7x) fallback


def _default_num_partitions():
    # v7x has 2 TensorCores per chip; shard the leading grid axis across them.
    try:
        kind = jax.devices()[0].device_kind.lower()
    except Exception:
        return 1
    return 2 if "v7" in kind else 1


def _focal_loss_kernel(y_pred_ref, y_true_ref, alpha_ref, out_ref, acc_ref, *,
                       gamma, eps, suppress_bkg, inv_count,
                       hw, tile, tiles_per_part, needs_mask):
    i = pl.program_id(1)

    @pl.when(i == 0)
    def _init():
        acc_ref[...] = jnp.zeros_like(acc_ref)

    y_pred = y_pred_ref[...]                   # (D, C, T)  input dtype (f32/bf16)
    alpha = alpha_ref[...]                     # (D, C, T)  input dtype
    y_true = y_true_ref[...]                   # (D, T)     int32
    d, c, t = y_pred.shape

    # One-hot select + class reduce in the input dtype (exact: at most one
    # nonzero addend per lane).  Iota kept at (1, C, 1) and broadcast by ==.
    class_ids = lax.broadcasted_iota(jnp.int32, (1, c, 1), 1)
    onehot = y_true[:, None, :] == class_ids                          # (D, C, T)
    p_t = jnp.sum(jnp.where(onehot, y_pred, jnp.zeros_like(y_pred)),
                  axis=1).astype(jnp.float32)                         # (D, T)

    # Reference quirk: prod[d,c,hw] = alpha[d,c,hw] * ch_sum[c,hw] (needs C == D),
    # so pre-reduce alpha over D and multiply on a (C, T) tensor.
    alpha_sum = jnp.sum(alpha, axis=0).astype(jnp.float32)            # (C, T)

    if needs_mask:
        # Ragged tail / overflow tiles: neutralize BEFORE the log so garbage
        # block data can never produce NaN/Inf, and zero its weight.
        start = (pl.program_id(0) * tiles_per_part + i) * tile
        lane = lax.broadcasted_iota(jnp.int32, (1, t), 1)
        valid = (start + lane) < hw                                   # (1, T)
        p_t = jnp.where(valid, p_t, 1.0)
        alpha_sum = jnp.where(valid, alpha_sum, 0.0)

    # Cross-entropy term (log base 2, as in the reference).
    ce = -jnp.log2(p_t + eps)                                         # (D, T)
    omp = 1.0 - p_t

    g = float(gamma)
    if g.is_integer() and g >= 1.0:
        mod = omp                               # (1-p)^g via g-1 multiplies
        for _ in range(int(g) - 1):
            mod = mod * omp
    elif g == 0.0:
        mod = jnp.ones_like(omp)
    else:
        mod = jnp.power(omp, g)

    if suppress_bkg:
        # Only background pixels (label == 0) keep the modulating factor;
        # foreground cross-entropy passes through unscaled.
        mod = jnp.where(y_true == 0, mod, 1.0)

    ch_sum = mod * ce                           # (D, T) == sum over classes of focal
    acc_ref[...] += alpha_sum * ch_sum          # (C == D, T)

    @pl.when(i == pl.num_programs(1) - 1)
    def _finalize():
        out_ref[...] = jnp.reshape(jnp.sum(acc_ref[...]) * inv_count, (1, 1, 1))


def categorical_focal_loss(y_pred, y_true, alpha, *, gamma=2.0,
                           suppress_bkg=False, eps=1e-6,
                           num_partitions=None, max_tile=32768,
                           vmem_budget_bytes=None):
    """y_pred: (D, C, H, W) probabilities, y_true: (D, H, W) int labels,
    alpha: (D, C, H, W) class-weight mask.  f32 or bf16 accepted for y_pred/alpha
    (bf16 halves the dominant HBM traffic).  Returns a scalar float32 loss."""
    d, c, h, w = y_pred.shape
    assert alpha.shape == y_pred.shape
    assert y_true.shape == (d, h, w)
    # The reference's `alpha * sum(focal, dim=1)` broadcast implicitly requires C == D.
    assert c == d, "reference broadcast semantics require C == D"

    def as_compute(x):
        return x if x.dtype in (jnp.float32, jnp.bfloat16) else x.astype(jnp.float32)

    hw = h * w
    yp = as_compute(y_pred).reshape(d, c, hw)
    al = as_compute(alpha).reshape(d, c, hw)
    yt = y_true.reshape(d, hw).astype(jnp.int32)

    # Tiny inputs only: pad up to one full 128-lane tile with neutral values
    # (y_pred=1 -> ce ~ 0, alpha=0 -> zero weight).  No pad (and thus no extra
    # HBM pass) in the common case; ragged tails are masked inside the kernel.
    hw_padded = hw
    if hw < 128:
        pad = 128 - hw
        yp = jnp.pad(yp, ((0, 0), (0, 0), (0, pad)), constant_values=1.0)
        al = jnp.pad(al, ((0, 0), (0, 0), (0, pad)), constant_values=0.0)
        yt = jnp.pad(yt, ((0, 0), (0, pad)), constant_values=0)
        hw_padded = 128

    if num_partitions is None:
        num_partitions = _default_num_partitions()
    num_partitions = max(1, int(num_partitions))

    # --- tile selection: biggest lane tile whose sublane-padded, double-buffered
    #     working set fits the per-generation VMEM budget.
    vmem_cap = _vmem_capacity_bytes()
    if vmem_budget_bytes is None:
        vmem_budget_bytes = (vmem_cap * 3) // 8     # ~24 MiB on v7x, ~48 MiB on v5e/v6e

    per_lane = 2 * (d * _padded_rows(c, yp.dtype) * jnp.dtype(yp.dtype).itemsize
                    + d * _padded_rows(c, al.dtype) * jnp.dtype(al.dtype).itemsize
                    + _padded_rows(d, jnp.int32) * 4)       # double-buffered inputs
    per_lane += _padded_rows(c, jnp.float32) * 4            # resident accumulator

    tile = max(128, (vmem_budget_bytes // per_lane) // 128 * 128)
    tile_cap = max(128, min((hw_padded // 128) * 128,
                            _round_up(pl.cdiv(hw_padded, num_partitions), 128)))
    tile = min(tile, max_tile, tile_cap)
    # If profiling ever shows exposed DMA waits with small tiles, add
    # pipeline_mode=pl.Buffered(3) on the two big in_specs (re-check VMEM budget).

    num_tiles = pl.cdiv(hw_padded, tile)
    num_partitions = min(num_partitions, num_tiles)
    tiles_per_part = pl.cdiv(num_tiles, num_partitions)
    needs_mask = (num_partitions * tiles_per_part * tile) != hw_padded

    inv_count = 1.0 / float(d * c * hw)          # mean over the TRUE element count

    working_set = per_lane * tile + (1 << 20)
    vmem_limit = max(32 * 1024 * 1024, working_set + 8 * 1024 * 1024)
    vmem_limit = min(vmem_limit, (vmem_cap * 7) // 8)

    kernel = functools.partial(
        _focal_loss_kernel, gamma=gamma, eps=eps, suppress_bkg=suppress_bkg,
        inv_count=inv_count, hw=hw_padded, tile=tile,
        tiles_per_part=tiles_per_part, needs_mask=needs_mask)

    last_tile = num_tiles - 1

    def tile_idx(p, i):
        # Clamp so overflow slots of the last partition never DMA out of bounds;
        # the kernel-side lane mask zeroes their contribution.
        return jnp.minimum(p * tiles_per_part + i, last_tile)

    bytes_accessed = (d * c * hw_padded * (jnp.dtype(yp.dtype).itemsize
                                           + jnp.dtype(al.dtype).itemsize)
                      + d * hw_padded * 4 + num_partitions * 4)
    cost = pl.CostEstimate(flops=8 * d * c * hw_padded + 10 * d * hw_padded,
                           transcendentals=d * hw_padded,
                           bytes_accessed=bytes_accessed)

    # CORE_PARALLEL genuinely shards the partition axis across v7x's two
    # TensorCores; on single-TC parts num_partitions == 1 and this is moot.
    part_sem = pltpu.CORE_PARALLEL if num_partitions > 1 else pltpu.PARALLEL

    out = pl.pallas_call(
        kernel,
        out_shape=jax.ShapeDtypeStruct((num_partitions, 1, 1), jnp.float32),
        grid_spec=pltpu.PrefetchScalarGridSpec(
            num_scalar_prefetch=0,
            grid=(num_partitions, tiles_per_part),
            in_specs=[
                pl.BlockSpec((d, c, tile), lambda p, i: (0, 0, tile_idx(p, i))),  # y_pred
                pl.BlockSpec((d, tile), lambda p, i: (0, tile_idx(p, i))),        # y_true
                pl.BlockSpec((d, c, tile), lambda p, i: (0, 0, tile_idx(p, i))),  # alpha
            ],
            out_specs=pl.BlockSpec((1, 1, 1), lambda p, i: (p, 0, 0)),
            scratch_shapes=[pltpu.VMEM((c, tile), jnp.float32)],
        ),
        compiler_params=pltpu.CompilerParams(
            dimension_semantics=(part_sem, pltpu.ARBITRARY),
            vmem_limit_bytes=int(vmem_limit)),
        cost_estimate=cost,
    )(yp, yt, al)
    # Per-partition partials are already divided by the true element count.
    return jnp.sum(out)


if __name__ == "__main__":
    key = jax.random.PRNGKey(0)

    # pure-JAX reference mirroring the PyTorch forward
    def ref_loss(y_pred, y_true, alpha, gamma, suppress_bkg, eps=1e-6):
        C = y_pred.shape[1]
        one_hot = jax.nn.one_hot(y_true, C, axis=1, dtype=jnp.float32)
        ce = -one_hot * jnp.log2(y_pred + eps)
        if suppress_bkg:
            bkg = jnp.power(1.0 - y_pred[:, 0], gamma) * ce[:, 0]
            focal = jnp.concatenate([bkg[:, None], ce[:, 1:]], axis=1)
        else:
            focal = jnp.power(1.0 - y_pred, gamma) * ce
        return jnp.mean(alpha * jnp.sum(focal, axis=1))

    def make_inputs(k, D, C, H, W):
        k1, k2, k3 = jax.random.split(k, 3)
        logits = jax.random.normal(k1, (D, C, H, W), jnp.float32)
        y_pred = jax.nn.softmax(logits, axis=1)             # probabilities
        y_true = jax.random.randint(k2, (D, H, W), 0, C)    # labels
        alpha = jax.random.uniform(k3, (D, C, H, W), jnp.float32, 0.5, 2.0)
        return y_pred, y_true, alpha

    # C == D is required by the reference's alpha * sum(...) broadcast.
    # The (3, 13, 11) cases exercise the in-kernel ragged-tail masking path.
    cases = [
        (4, 16, 16, 2.0, False),
        (4, 16, 16, 2.0, True),
        (4, 16, 16, 1.5, False),
        (3, 13, 11, 2.0, False),
        (3, 13, 11, 2.0, True),
    ]
    for idx, (D, H, W, gamma, sb) in enumerate(cases):
        y_pred, y_true, alpha = make_inputs(jax.random.fold_in(key, idx), D, D, H, W)
        got = categorical_focal_loss(y_pred, y_true, alpha, gamma=gamma,
                                     suppress_bkg=sb, eps=1e-6)
        got = jax.block_until_ready(got)
        want = ref_loss(y_pred, y_true, alpha, gamma, sb)
        assert jnp.allclose(got, want, rtol=1e-5, atol=1e-6), (D, H, W, gamma, sb, got, want)

    print("KERNEL_OK")
</pallas_src>

<mosaic_0001>
module attributes {stable_mosaic.version = 11 : i64} {
  func.func @_focal_loss_kernel(%arg0: i32, %arg1: i32, %arg2: memref<4x4x256xf32, #tpu.memory_space<vmem>>, %arg3: memref<4x256xi32, #tpu.memory_space<vmem>>, %arg4: memref<4x4x256xf32, #tpu.memory_space<vmem>>, %arg5: memref<1x1x1xf32, #tpu.memory_space<vmem>>, %arg6: memref<4x256xf32, #tpu.memory_space<vmem>>) attributes {dimension_semantics = [#tpu.dimension_semantics<parallel>, #tpu.dimension_semantics<arbitrary>], iteration_bounds = array<i64: 1, 1>, scalar_prefetch = 0 : i64, scratch_operands = 1 : i64, tpu.core_type = #tpu.core_type<tc>, window_params = [{transform_indices = @transform_0, window_bounds = array<i64: 4, 4, 256>}, {transform_indices = @transform_1, window_bounds = array<i64: 4, 256>}, {transform_indices = @transform_2, window_bounds = array<i64: 4, 4, 256>}, {transform_indices = @transform_3, window_bounds = array<i64: 1, 1, 1>}]} {
    %c0_i32 = arith.constant 0 : i32
    %0 = arith.cmpi eq, %arg1, %c0_i32 : i32
    %1 = arith.extui %0 : i1 to i32
    %c0_i32_0 = arith.constant 0 : i32
    %2 = arith.cmpi ne, %1, %c0_i32_0 : i32
    scf.if %2 {
      %cst_20 = arith.constant 0.000000e+00 : f32
      %34 = vector.broadcast %cst_20 : f32 to vector<4x256xf32>
      %c0_21 = arith.constant 0 : index
      %c0_22 = arith.constant 0 : index
      %35 = vector.load %arg6[%c0_21, %c0_22] : memref<4x256xf32, #tpu.memory_space<vmem>>, vector<4x256xf32>
      tpu.vector_store %arg6[%c0_21, %c0_22], %34 {strides = array<i32>} : memref<4x256xf32, #tpu.memory_space<vmem>>, vector<4x256xf32>,
    } else {
    }
    %c0 = arith.constant 0 : index
    %c0_1 = arith.constant 0 : index
    %c0_2 = arith.constant 0 : index
    %3 = vector.load %arg2[%c0, %c0_1, %c0_2] : memref<4x4x256xf32, #tpu.memory_space<vmem>>, vector<4x4x256xf32>
    %c0_3 = arith.constant 0 : index
    %c0_4 = arith.constant 0 : index
    %c0_5 = arith.constant 0 : index
    %4 = vector.load %arg4[%c0_3, %c0_4, %c0_5] : memref<4x4x256xf32, #tpu.memory_space<vmem>>, vector<4x4x256xf32>
    %c0_6 = arith.constant 0 : index
    %c0_7 = arith.constant 0 : index
    %5 = vector.load %arg3[%c0_6, %c0_7] : memref<4x256xi32, #tpu.memory_space<vmem>>, vector<4x256xi32>
    %6 = tpu.iota {dimensions = array<i32: 1>} : vector<1x4x1xi32>
    %7 = vector.shape_cast %5 : vector<4x256xi32> to vector<4x1x256xi32>
    %8 = vector.broadcast %7 : vector<4x1x256xi32> to vector<4x4x256xi32>
    %9 = vector.broadcast %6 : vector<1x4x1xi32> to vector<4x4x256xi32>
    %10 = arith.cmpi eq, %8, %9 : vector<4x4x256xi32>
    %cst = arith.constant 0.000000e+00 : f32
    %11 = vector.broadcast %cst : f32 to vector<4x4x256xf32>
    %12 = arith.select %10, %3, %11 : vector<4x4x256xi1>, vector<4x4x256xf32>
    %cst_8 = arith.constant dense<0.000000e+00> : vector<4x256xf32>
    %13 = vector.multi_reduction <add>, %12, %cst_8 [1] : vector<4x4x256xf32> to vector<4x256xf32>
    %cst_9 = arith.constant dense<0.000000e+00> : vector<4x256xf32>
    %14 = vector.multi_reduction <add>, %4, %cst_9 [0] : vector<4x4x256xf32> to vector<4x256xf32>
    %cst_10 = arith.constant 9.99999997E-7 : f32
    %15 = vector.broadcast %cst_10 : f32 to vector<4x256xf32>
    %16 = arith.addf %13, %15 : vector<4x256xf32>
    %17 = math.log %16 : vector<4x256xf32>
    %cst_11 = arith.constant 2.000000e+00 : f32
    %18 = math.log %cst_11 : f32
    %19 = vector.broadcast %18 : f32 to vector<4x256xf32>
    %20 = arith.divf %17, %19 : vector<4x256xf32>
    %cst_12 = arith.constant 0.000000e+00 : f32
    %21 = vector.broadcast %cst_12 : f32 to vector<4x256xf32>
    %22 = arith.subf %21, %20 : vector<4x256xf32>
    %cst_13 = arith.constant 1.000000e+00 : f32
    %23 = vector.broadcast %cst_13 : f32 to vector<4x256xf32>
    %24 = arith.subf %23, %13 : vector<4x256xf32>
    %25 = arith.mulf %24, %24 : vector<4x256xf32>
    %26 = arith.mulf %25, %22 : vector<4x256xf32>
    %c0_14 = arith.constant 0 : index
    %c0_15 = arith.constant 0 : index
    %27 = vector.load %arg6[%c0_14, %c0_15] : memref<4x256xf32, #tpu.memory_space<vmem>>, vector<4x256xf32>
    %28 = arith.mulf %14, %26 : vector<4x256xf32>
    %29 = arith.addf %27, %28 : vector<4x256xf32>
    %c0_16 = arith.constant 0 : index
    %c0_17 = arith.constant 0 : index
    %30 = vector.load %arg6[%c0_16, %c0_17] : memref<4x256xf32, #tpu.memory_space<vmem>>, vector<4x256xf32>
    tpu.vector_store %arg6[%c0_16, %c0_17], %29 {strides = array<i32>} : memref<4x256xf32, #tpu.memory_space<vmem>>, vector<4x256xf32>,
    %c0_i32_18 = arith.constant 0 : i32
    %31 = arith.cmpi eq, %arg1, %c0_i32_18 : i32
    %32 = arith.extui %31 : i1 to i32
    %c0_i32_19 = arith.constant 0 : i32
    %33 = arith.cmpi ne, %32, %c0_i32_19 : i32
    scf.if %33 {
      %c0_20 = arith.constant 0 : index
      %c0_21 = arith.constant 0 : index
      %34 = vector.load %arg6[%c0_20, %c0_21] : memref<4x256xf32, #tpu.memory_space<vmem>>, vector<4x256xf32>
      %35 = vector.shape_cast %34 : vector<4x256xf32> to vector<1x4x256xf32>
      %cst_22 = arith.constant dense<0.000000e+00> : vector<1xf32>
      %36 = vector.multi_reduction <add>, %35, %cst_22 [1, 2] : vector<1x4x256xf32> to vector<1xf32>
      %37 = vector.shape_cast %36 : vector<1xf32> to vector<1x1x1xf32>
      %38 = vector.extract %37[0, 0, 0] : f32 from vector<1x1x1xf32>
      %cst_23 = arith.constant 2.44140625E-4 : f32
      %39 = arith.mulf %38, %cst_23 : f32
      %40 = vector.broadcast %39 : f32 to vector<1x1x1xf32>
      %c0_24 = arith.constant 0 : index
      %c0_25 = arith.constant 0 : index
      %c0_26 = arith.constant 0 : index
      %41 = vector.load %arg5[%c0_24, %c0_25, %c0_26] : memref<1x1x1xf32, #tpu.memory_space<vmem>>, vector<1x1x1xf32>
      tpu.vector_store %arg5[%c0_24, %c0_25, %c0_26], %40 {strides = array<i32>} : memref<1x1x1xf32, #tpu.memory_space<vmem>>, vector<1x1x1xf32>,
    } else {
    }
    return
  }
  func.func @transform_0(%arg0: i32, %arg1: i32) -> (i32, i32, i32) {
    %c1_i32 = arith.constant 1 : i32
    %0 = arith.muli %arg0, %c1_i32 : i32
    %1 = arith.addi %0, %arg1 : i32
    %c0_i32 = arith.constant 0 : i32
    %2 = arith.minsi %1, %c0_i32 : i32
    %c0_i32_0 = arith.constant 0 : i32
    %c0_i32_1 = arith.constant 0 : i32
    %c0_i32_2 = arith.constant 0 : i32
    return %c0_i32_0, %c0_i32_1, %2 : i32, i32, i32
  }
  func.func @transform_1(%arg0: i32, %arg1: i32) -> (i32, i32) {
    %c1_i32 = arith.constant 1 : i32
    %0 = arith.muli %arg0, %c1_i32 : i32
    %1 = arith.addi %0, %arg1 : i32
    %c0_i32 = arith.constant 0 : i32
    %2 = arith.minsi %1, %c0_i32 : i32
    %c0_i32_0 = arith.constant 0 : i32
    %c0_i32_1 = arith.constant 0 : i32
    return %c0_i32_0, %2 : i32, i32
  }
  func.func @transform_2(%arg0: i32, %arg1: i32) -> (i32, i32, i32) {
    %c1_i32 = arith.constant 1 : i32
    %0 = arith.muli %arg0, %c1_i32 : i32
    %1 = arith.addi %0, %arg1 : i32
    %c0_i32 = arith.constant 0 : i32
    %2 = arith.minsi %1, %c0_i32 : i32
    %c0_i32_0 = arith.constant 0 : i32
    %c0_i32_1 = arith.constant 0 : i32
    %c0_i32_2 = arith.constant 0 : i32
    return %c0_i32_0, %c0_i32_1, %2 : i32, i32, i32
  }
  func.func @transform_3(%arg0: i32, %arg1: i32) -> (i32, i32, i32) {
    %c0_i32 = arith.constant 0 : i32
    %c0_i32_0 = arith.constant 0 : i32
    %c0_i32_1 = arith.constant 0 : i32
    return %arg0, %c0_i32, %c0_i32_0 : i32, i32, i32
  }
}

</mosaic_0001>

<llo_original>
// kernel: tpu_custom_call.1
$region0: #{tpu_custom_call.1}
  #allocation0 [shape = 'u32[]', space=smem, size = 0x4, offset = 0x4, fixed_abs, tag = 'smem constant byte address 0x4 - core index']
  #allocation1 [shape = 'u32[144,128]{1,0:T(1,128)}', space=vmem, size = 0x12000, scoped, tag = 'internal scratch']
  #allocation2 [shape = 'f32[4,256]{1,0:T(4,128)}', space=vmem, size = 0x1000, scoped, tag = 'scratch operand']
  %s0 = inlined_call_operand.hbm [shape: f32[4,4,256], index: 0, kind: input, shape index: {}]
  %s1 = inlined_call_operand.hbm [shape: s32[4,256], index: 1, kind: input, shape index: {}]
  %s2 = inlined_call_operand.hbm [shape: f32[4,4,256], index: 2, kind: input, shape index: {}]
  %s3 = inlined_call_operand.hbm [shape: f32[1,1,1], index: 3, kind: output, shape index: {}]
  %s4 = sld [smem:[#allocation0]]
  $region42: #{tpu_custom_call.1} parent=0
    _
  %s6 = ssub.s32 1, %s4
  %s7 = scalar_select 0, %s6, %s4
  $region1: #{tpu_custom_call.1} parent=0
    #allocation3 [shape = 'u8[16384]{0}', space=vmem, size = 0x4000, scoped, tag = 'input window, operand 0, single buffered']
    #allocation4 [shape = 's32[1]{0}', space=sflag, size = 0x4, scoped, tag = 'scoped memory for tpu_custom_call.1']
    #allocation5 [shape = 's32[1]{0}', space=sflag, size = 0x4, scoped, tag = 'scoped memory for tpu_custom_call.1']
    #allocation6 [shape = 'u8[4096]{0}', space=vmem, size = 0x1000, scoped, tag = 'input window, operand 1, single buffered']
    #allocation7 [shape = 's32[1]{0}', space=sflag, size = 0x4, scoped, tag = 'scoped memory for tpu_custom_call.1']
    #allocation8 [shape = 'u8[16384]{0}', space=vmem, size = 0x4000, scoped, tag = 'input window, operand 2, single buffered']
    #allocation9 [shape = 'u8[512]{0}', space=vmem, size = 0x400, scoped, tag = 'output window, operand 0, single buffered']
    %8 = vsyncpa [#allocation4], 0
    %9 = vsyncpa [#allocation7], 0
    %10 = vsyncpa [#allocation5], 0
    // Predicated region
    $region2: #{tpu_custom_call.1} parent=1 // pred_check
      _
    $region3: #{tpu_custom_call.1} parent=1 // pred_check_branch
      %12 = sbr.rel (0) target = $region5
    $region4: #{tpu_custom_call.1} parent=1 // pred_region
      %s13 = sadd.s32 0, 0
      %p14 = scmp.lt.s32.totalorder %s13, 0
      %s15 = scalar_select %p14, %s13, 0
      %s16 = smul.u32 2, %s15
      %s18 = ssub.s32 512, 512
      %19 = vsyncadd [#allocation4], %s18
      %s20 = smul.addr %s16, 64
      %s21 = scalar_lea.hbm %s0, %s20
      %s22 = sshll.u32 [#allocation3], 4
      %s23 = int_to_ptr.vmem [resolvable:$true] %s22
      %28 = dma.hbm_to_vmem [thread:$0]  %s21, 512, %s23, [#allocation4], 128, 128, 8
    $region5: #{tpu_custom_call.1} parent=1 // pred_fallthru
      _
    // Predicated region
    $region6: #{tpu_custom_call.1} parent=1 // pred_check
      _
    $region7: #{tpu_custom_call.1} parent=1 // pred_check_branch
      %30 = sbr.rel (0) target = $region9
    $region8: #{tpu_custom_call.1} parent=1 // pred_region
      %s31 = sadd.s32 0, 0
      %p32 = scmp.lt.s32.totalorder %s31, 0
      %s33 = scalar_select %p32, %s31, 0
      %s34 = smul.u32 2, %s33
      %s36 = ssub.s32 128, 128
      %37 = vsyncadd [#allocation7], %s36
      %s38 = smul.addr %s34, 64
      %s39 = scalar_lea.hbm %s1, %s38
      %s41 = sshll.u32 [#allocation6], 4
      %s42 = int_to_ptr.vmem [resolvable:$true] %s41
      %44 = dma.hbm_to_vmem [thread:$0]  %s39, 128, %s42, [#allocation7]
    $region9: #{tpu_custom_call.1} parent=1 // pred_fallthru
      _
    // Predicated region
    $region10: #{tpu_custom_call.1} parent=1 // pred_check
      _
    $region11: #{tpu_custom_call.1} parent=1 // pred_check_branch
      %46 = sbr.rel (0) target = $region13
    $region12: #{tpu_custom_call.1} parent=1 // pred_region
      %s47 = sadd.s32 0, 0
      %p48 = scmp.lt.s32.totalorder %s47, 0
      %s49 = scalar_select %p48, %s47, 0
      %s50 = smul.u32 2, %s49
      %s52 = ssub.s32 512, 512
      %53 = vsyncadd [#allocation7], %s52
      %s54 = smul.addr %s50, 64
      %s55 = scalar_lea.hbm %s2, %s54
      %s56 = sshll.u32 [#allocation8], 4
      %s57 = int_to_ptr.vmem [resolvable:$true] %s56
      %62 = dma.hbm_to_vmem [thread:$0]  %s55, 512, %s57, [#allocation7], 128, 128, 8
    $region13: #{tpu_custom_call.1} parent=1 // pred_fallthru
      _
    // Predicated region
    $region14: #{tpu_custom_call.1} parent=1 // pred_check
      _
    $region15: #{tpu_custom_call.1} parent=1 // pred_check_branch
      %64 = sbr.rel (0) target = $region17
    $region16: #{tpu_custom_call.1} parent=1 // pred_region
      %65 = dma.done [#allocation4], 512
    $region17: #{tpu_custom_call.1} parent=1 // pred_fallthru
      _
    // Predicated region
    $region18: #{tpu_custom_call.1} parent=1 // pred_check
      _
    $region19: #{tpu_custom_call.1} parent=1 // pred_check_branch
      %67 = sbr.rel (0) target = $region21
    $region20: #{tpu_custom_call.1} parent=1 // pred_region
      %68 = dma.done [#allocation7], 128
    $region21: #{tpu_custom_call.1} parent=1 // pred_fallthru
      _
    // Predicated region
    $region22: #{tpu_custom_call.1} parent=1 // pred_check
      _
    $region23: #{tpu_custom_call.1} parent=1 // pred_check_branch
      %70 = sbr.rel (0) target = $region25
    $region24: #{tpu_custom_call.1} parent=1 // pred_region
      %71 = dma.done [#allocation7], 512
    $region25: #{tpu_custom_call.1} parent=1 // pred_fallthru
      _
    %s72 = sadd.s32 0, 0
    %p73 = scmp.lt.s32.totalorder %s72, 0
    %s74 = scalar_select %p73, %s72, 0
    %s75 = smul.u32 2, %s74
    %s76 = sadd.s32 0, 0
    %p77 = scmp.lt.s32.totalorder %s76, 0
    %s78 = scalar_select %p77, %s76, 0
    %s79 = smul.u32 2, %s78
    %s80 = sadd.s32 0, 0
    %p81 = scmp.lt.s32.totalorder %s80, 0
    %s82 = scalar_select %p81, %s80, 0
    %s83 = smul.u32 2, %s82
    %p84 = scmp.eq.s32.totalorder 0, 0
    // Predicated region
    $region26: #{tpu_custom_call.1} parent=1 // pred_check
      %p85 = pneg %p84
    $region27: #{tpu_custom_call.1} parent=1 // pred_check_branch
      %87 = sbr.rel (%p85) target = $region29
    $region28: #{tpu_custom_call.1} parent=1 // pred_region
      %88 = vst [vmem:[#allocation2] sm:$0xff] 0.0
    $region29: #{tpu_custom_call.1} parent=1 // pred_fallthru
      _
    %v89 = vld [vmem:[#allocation3] sm:$0xff]
    %v90 = vld [vmem:[#allocation3 + $0x8] sm:$0xff]
    %v91 = vld [vmem:[#allocation3 + $0x10] sm:$0xff]
    %v92 = vld [vmem:[#allocation3 + $0x18] sm:$0xff]
    %v93 = vld [vmem:[#allocation8] sm:$0xff]
    %v94 = vld [vmem:[#allocation8 + $0x8] sm:$0xff]
    %v95 = vld [vmem:[#allocation8 + $0x10] sm:$0xff]
    %v96 = vld [vmem:[#allocation8 + $0x18] sm:$0xff]
    %v97 = vld [vmem:[#allocation6] sm:$0xff]
    %v98 = vlaneseq
    %v99 = vshrl.u32 %v98, 7
    %v101 = vunpack.c.l.s4 1966171168
    %v102 = vunpack.c.0.s8 %v101
    %v103 = vlaneseq
    %v104 = vshrl.u32 %v103, 7
    %v105 = vsub.s32 %v102, %v104
    %v106 = vrot.slane %v97, %v105
    %v107 = vcombine.high %v106, %v106
    %v109 = vunpack.c.l.s4 1966171168
    %v110 = vunpack.c.0.s8 %v109
    %v111 = vlaneseq
    %v112 = vshrl.u32 %v111, 7
    %v113 = vsub.s32 %v110, %v112
    %v114 = vrot.slane %v106, %v113
    %v116 = vunpack.c.l.s4 1966171168
    %v117 = vunpack.c.0.s8 %v116
    %v118 = vlaneseq
    %v119 = vshrl.u32 %v118, 7
    %v120 = vsub.s32 %v117, %v119
    %v121 = vrot.slane %v107, %v120
    %v122 = vcombine.high %v114, %v114
    %v123 = vcombine.high %v121, %v121
    %v124 = vlaneseq
    %v125 = vshrl.u32 %v124, 7
    %v126 = vsub.s32 0, %v125
    %v127 = vrot.slane %v114, %v126
    %v128 = vlaneseq
    %v129 = vshrl.u32 %v128, 7
    %v130 = vsub.s32 1, %v129
    %v131 = vrot.slane %v114, %v130
    %v132 = vlaneseq
    %v133 = vshrl.u32 %v132, 7
    %v134 = vsub.s32 0, %v133
    %v135 = vrot.slane %v121, %v134
    %v136 = vlaneseq
    %v137 = vshrl.u32 %v136, 7
    %v138 = vsub.s32 1, %v137
    %v139 = vrot.slane %v121, %v138
    %v140 = vlaneseq
    %v141 = vshrl.u32 %v140, 7
    %v142 = vsub.s32 0, %v141
    %v143 = vrot.slane %v122, %v142
    %v144 = vlaneseq
    %v145 = vshrl.u32 %v144, 7
    %v146 = vsub.s32 1, %v145
    %v147 = vrot.slane %v122, %v146
    %v148 = vlaneseq
    %v149 = vshrl.u32 %v148, 7
    %v150 = vsub.s32 0, %v149
    %v151 = vrot.slane %v123, %v150
    %v152 = vlaneseq
    %v153 = vshrl.u32 %v152, 7
    %v154 = vsub.s32 1, %v153
    %v155 = vrot.slane %v123, %v154
    %vm156 = vcmp.eq.s32.totalorder %v127, %v99
    %vm157 = vcmp.eq.s32.totalorder %v131, %v99
    %vm158 = vcmp.eq.s32.totalorder %v135, %v99
    %vm159 = vcmp.eq.s32.totalorder %v139, %v99
    %vm160 = vcmp.eq.s32.totalorder %v143, %v99
    %vm161 = vcmp.eq.s32.totalorder %v147, %v99
    %vm162 = vcmp.eq.s32.totalorder %v151, %v99
    %vm163 = vcmp.eq.s32.totalorder %v155, %v99
    %v168 = vcombine.high %v89, %v89
    %v169 = vcombine.high %v90, %v90
    %v170 = vcombine.high %v91, %v91
    %v171 = vcombine.high %v92, %v92
    %v176 = vsel %vm156, %v89, 0.0
    %v177 = vsel %vm157, %v168, 0.0
    %v178 = vsel %vm158, %v90, 0.0
    %v179 = vsel %vm159, %v169, 0.0
    %v180 = vsel %vm160, %v91, 0.0
    %v181 = vsel %vm161, %v170, 0.0
    %v182 = vsel %vm162, %v92, 0.0
    %v183 = vsel %vm163, %v171, 0.0
    %vm184 = vcmask 1043456
    %v185 = vsel %vm184, %v176, 0.0
    %v186 = vrot.slane %v185, 4
    %v187 = vadd.f32 %v185, %v186
    %v188 = vrot.slane %v187, 2
    %v189 = vadd.f32 %v187, %v188
    %v190 = vrot.slane %v189, 1
    %v191 = vadd.f32 %v189, %v190
    %v192 = vsel %vm184, %v177, 0.0
    %v193 = vrot.slane %v192, 4
    %v194 = vadd.f32 %v192, %v193
    %v195 = vrot.slane %v194, 2
    %v196 = vadd.f32 %v194, %v195
    %v197 = vrot.slane %v196, 1
    %v198 = vadd.f32 %v196, %v197
    %v199 = vsel %vm184, %v178, 0.0
    %v200 = vrot.slane %v199, 4
    %v201 = vadd.f32 %v199, %v200
    %v202 = vrot.slane %v201, 2
    %v203 = vadd.f32 %v201, %v202
    %v204 = vrot.slane %v203, 1
    %v205 = vadd.f32 %v203, %v204
    %v206 = vsel %vm184, %v179, 0.0
    %v207 = vrot.slane %v206, 4
    %v208 = vadd.f32 %v206, %v207
    %v209 = vrot.slane %v208, 2
    %v210 = vadd.f32 %v208, %v209
    %v211 = vrot.slane %v210, 1
    %v212 = vadd.f32 %v210, %v211
    %v213 = vsel %vm184, %v180, 0.0
    %v214 = vrot.slane %v213, 4
    %v215 = vadd.f32 %v213, %v214
    %v216 = vrot.slane %v215, 2
    %v217 = vadd.f32 %v215, %v216
    %v218 = vrot.slane %v217, 1
    %v219 = vadd.f32 %v217, %v218
    %v220 = vsel %vm184, %v181, 0.0
    %v221 = vrot.slane %v220, 4
    %v222 = vadd.f32 %v220, %v221
    %v223 = vrot.slane %v222, 2
    %v224 = vadd.f32 %v222, %v223
    %v225 = vrot.slane %v224, 1
    %v226 = vadd.f32 %v224, %v225
    %v227 = vsel %vm184, %v182, 0.0
    %v228 = vrot.slane %v227, 4
    %v229 = vadd.f32 %v227, %v228
    %v230 = vrot.slane %v229, 2
    %v231 = vadd.f32 %v229, %v230
    %v232 = vrot.slane %v231, 1
    %v233 = vadd.f32 %v231, %v232
    %v234 = vsel %vm184, %v183, 0.0
    %v235 = vrot.slane %v234, 4
    %v236 = vadd.f32 %v234, %v235
    %v237 = vrot.slane %v236, 2
    %v238 = vadd.f32 %v236, %v237
    %v239 = vrot.slane %v238, 1
    %v240 = vadd.f32 %v238, %v239
    %v245 = vcombine.high %v93, %v93
    %v246 = vcombine.high %v94, %v94
    %v247 = vcombine.high %v95, %v95
    %v248 = vcombine.high %v96, %v96
    %v253 = vsel %vm184, %v93, 0.0
    %v254 = vsel %vm184, %v94, 0.0
    %v255 = vadd.f32 %v253, %v254
    %v256 = vsel %vm184, %v95, 0.0
    %v257 = vadd.f32 %v255, %v256
    %v258 = vsel %vm184, %v96, 0.0
    %v259 = vadd.f32 %v257, %v258
    %v260 = vsel %vm184, %v245, 0.0
    %v261 = vsel %vm184, %v246, 0.0
    %v262 = vadd.f32 %v260, %v261
    %v263 = vsel %vm184, %v247, 0.0
    %v264 = vadd.f32 %v262, %v263
    %v265 = vsel %vm184, %v248, 0.0
    %v266 = vadd.f32 %v264, %v265
    %v267 = vadd.f32 %v191, 1e-06
    %v268 = vadd.f32 %v198, 1e-06
    %v269 = vadd.f32 %v205, 1e-06
    %v270 = vadd.f32 %v212, 1e-06
    %v271 = vadd.f32 %v219, 1e-06
    %v272 = vadd.f32 %v226, 1e-06
    %v273 = vadd.f32 %v233, 1e-06
    %v274 = vadd.f32 %v240, 1e-06
    %v275 = vlog2.pop %v267
    %v276 = vmul.f32 %v275, 0.6931472
    %v277 = vlog2.pop %v268
    %v278 = vmul.f32 %v277, 0.6931472
    %v279 = vlog2.pop %v269
    %v280 = vmul.f32 %v279, 0.6931472
    %v281 = vlog2.pop %v270
    %v282 = vmul.f32 %v281, 0.6931472
    %v283 = vlog2.pop %v271
    %v284 = vmul.f32 %v283, 0.6931472
    %v285 = vlog2.pop %v272
    %v286 = vmul.f32 %v285, 0.6931472
    %v287 = vlog2.pop %v273
    %v288 = vmul.f32 %v287, 0.6931472
    %v289 = vlog2.pop %v274
    %v290 = vmul.f32 %v289, 0.6931472
    %v291 = vrcp.pop 0.6931472
    %v292 = vmul.f32 %v276, %v291
    %v293 = vmul.f32 %v278, %v291
    %v294 = vmul.f32 %v280, %v291
    %v295 = vmul.f32 %v282, %v291
    %v296 = vmul.f32 %v284, %v291
    %v297 = vmul.f32 %v286, %v291
    %v298 = vmul.f32 %v288, %v291
    %v299 = vmul.f32 %v290, %v291
    %v300 = vsub.f32 0.0, %v292
    %v301 = vsub.f32 0.0, %v293
    %v302 = vsub.f32 0.0, %v294
    %v303 = vsub.f32 0.0, %v295
    %v304 = vsub.f32 0.0, %v296
    %v305 = vsub.f32 0.0, %v297
    %v306 = vsub.f32 0.0, %v298
    %v307 = vsub.f32 0.0, %v299
    %v308 = vsub.f32 1.0, %v191
    %v309 = vsub.f32 1.0, %v198
    %v310 = vsub.f32 1.0, %v205
    %v311 = vsub.f32 1.0, %v212
    %v312 = vsub.f32 1.0, %v219
    %v313 = vsub.f32 1.0, %v226
    %v314 = vsub.f32 1.0, %v233
    %v315 = vsub.f32 1.0, %v240
    %v316 = vmul.f32 %v308, %v308
    %v317 = vmul.f32 %v309, %v309
    %v318 = vmul.f32 %v310, %v310
    %v319 = vmul.f32 %v311, %v311
    %v320 = vmul.f32 %v312, %v312
    %v321 = vmul.f32 %v313, %v313
    %v322 = vmul.f32 %v314, %v314
    %v323 = vmul.f32 %v315, %v315
    %v324 = vmul.f32 %v316, %v300
    %v325 = vmul.f32 %v317, %v301
    %v326 = vmul.f32 %v318, %v302
    %v327 = vmul.f32 %v319, %v303
    %v328 = vmul.f32 %v320, %v304
    %v329 = vmul.f32 %v321, %v305
    %v330 = vmul.f32 %v322, %v306
    %v331 = vmul.f32 %v323, %v307
    %v332 = vld [vmem:[#allocation2] sm:$0xff]
    %vm341 = vcmask 1041409
    %v342 = vsel %vm341, %v326, %v324
    %vm343 = vcmask 1042434
    %v344 = vsel %vm343, %v328, %v342
    %vm345 = vcmask 1043459
    %v346 = vsel %vm345, %v330, %v344
    %v347 = vsel %vm341, %v327, %v325
    %v348 = vsel %vm343, %v329, %v347
    %v349 = vsel %vm345, %v331, %v348
    %v352 = vmul.f32 %v259, %v346
    %v353 = vmul.f32 %v266, %v349
    %v356 = vcombine.low %v352, %v353
    %v358 = vadd.f32 %v332, %v356
    %359 = vst [vmem:[#allocation2] sm:$0xff] %v358
    // Predicated region
    $region30: #{tpu_custom_call.1} parent=1 // pred_check
      %p360 = pneg %p84
    $region31: #{tpu_custom_call.1} parent=1 // pred_check_branch
      %362 = sbr.rel (%p360) target = $region33
    $region32: #{tpu_custom_call.1} parent=1 // pred_region
      %v363 = vld [vmem:[#allocation2] sm:$0xff]
      %v365 = vcombine.high %v363, %v363
      %v367 = vsel %vm184, %v363, 0.0
      %v368 = vsel %vm184, %v365, 0.0
      %v369 = vadd.f32 %v367, %v368
      %370 = vadd.xlane.f32.xlu0 %v369
      %v371 = vpop.xlane.xlu0 %370
      %v372 = vrot.slane %v371, 4
      %v373 = vadd.f32 %v371, %v372
      %v374 = vrot.slane %v373, 2
      %v375 = vadd.f32 %v373, %v374
      %v376 = vrot.slane %v375, 1
      %v377 = vadd.f32 %v375, %v376
      %s378 = vtos %v377
      %s379 = smul.f32 %s378, 0.00024414063
      %v380 = vstv %s379
      %vm381 = vcmask 0
      %382 = vst.msk [vmem:[#allocation9] sm:$0x1] %vm381, %v380
    $region33: #{tpu_custom_call.1} parent=1 // pred_fallthru
      _
    // Predicated region
    $region34: #{tpu_custom_call.1} parent=1 // pred_check
      _
    $region35: #{tpu_custom_call.1} parent=1 // pred_check_branch
      %384 = sbr.rel (0) target = $region37
    $region36: #{tpu_custom_call.1} parent=1 // pred_region
      %s386 = ssub.s32 16, 16
      %387 = vsyncadd [#allocation5], %s386
      %s389 = sshll.u32 [#allocation9], 4
      %s390 = int_to_ptr.vmem [resolvable:$true] %s389
      %392 = dma.vmem_to_hbm [thread:$0]  %s390, 16, %s3, [#allocation5]
    $region37: #{tpu_custom_call.1} parent=1 // pred_fallthru
      _
    // Predicated region
    $region38: #{tpu_custom_call.1} parent=1 // pred_check
      _
    $region39: #{tpu_custom_call.1} parent=1 // pred_check_branch
      %394 = sbr.rel (0) target = $region41
    $region40: #{tpu_custom_call.1} parent=1 // pred_region
      %395 = dma.done [#allocation5], 16
    $region41: #{tpu_custom_call.1} parent=1 // pred_fallthru
      _
    %396 = vsyncpa [#allocation4], 1
    %397 = vsyncpa [#allocation7], 1
    %398 = vsyncpa [#allocation5], 1

</llo_original>
